<compile_context>
chip_gen: v7x
topology: tpu7x:2x2x1
jax: 0.10.0
libtpu: 0.0.40
codegen_flags: <defaults>
</compile_context>

<pallas_src>
import functools

import jax
import jax.numpy as jnp
from jax import lax
from jax.experimental import pallas as pl
from jax.experimental.pallas import tpu as pltpu


def _osg_decoder_kernel(feat_ref, w1_ref, b1_ref, w23_ref, b23_ref, out_ref, *,
                        sigma_act, out_dim):
    # feat_ref: (1, P, TM, C) bf16 tile for (batch n, sample-tile m).
    P = feat_ref.shape[1]

    # Plane mean folded into the first matmul: 1/P is pre-folded into w1, so we
    # accumulate P small (TM, C) @ (C, H) bf16 matmuls straight on the MXU (f32 acc)
    # instead of materializing a lane-sparse (TM, C) mean intermediate on the VPU.
    acc = jnp.dot(feat_ref[0, 0], w1_ref[...], preferred_element_type=jnp.float32)
    for p in range(1, P):
        acc = acc + jnp.dot(feat_ref[0, p], w1_ref[...],
                            preferred_element_type=jnp.float32)

    h = jax.nn.softplus(acc + b1_ref[...])                          # (TM, H), f32

    # Fused rgb + sigma head: single (TM, H) @ (H, out_dim + 1) matmul, one
    # lane-contiguous output slab.
    lin = jnp.dot(h, w23_ref[...], preferred_element_type=jnp.float32) + b23_ref[...]

    rgb = jax.nn.sigmoid(lin) * (1.0 + 2.0 * 0.001) - 0.001
    if sigma_act == "softplus":
        sig = jax.nn.softplus(lin)
    else:
        sig = lin  # 'linear'
    # TODO(synk): bias_act activations other than 'linear'/'softplus' are not mapped.

    col = lax.broadcasted_iota(jnp.int32, lin.shape, dimension=1)
    out_ref[0] = jnp.where(col < out_dim, rgb, sig).astype(out_ref.dtype)


def _pick_tile_m(M, per_row_bytes, vmem_budget, max_tile=4096):
    """Largest multiple-of-8 divisor of M that fits the VMEM budget (capped at max_tile)."""
    def tile_bytes(tm):
        return tm * per_row_bytes

    if M <= max_tile and tile_bytes(M) <= vmem_budget:
        return M
    best = None
    tm = 8
    while tm <= min(M, max_tile):
        if M % tm == 0 and tile_bytes(tm) <= vmem_budget:
            best = tm
        tm += 8
    return best if best is not None else M  # fallback: whole M (full-extent block)


def osg_decoder_forward(sampled_features, params, *, sigma_act="linear",
                        out_dtype=jnp.float32, max_tile_m=4096):
    """sampled_features: (N, P, M, C) float32.

    Returns dict rgb (N*M, out_dim), sigma (N*M, 1), in `out_dtype`
    (use jnp.bfloat16 if downstream tolerates it to halve the output HBM traffic).
    """
    N, P, M, C = sampled_features.shape
    w1, b1, w2, b2, w3, b3 = params
    H = w1.shape[1]
    out_dim = w2.shape[1]
    out_width = out_dim + 1

    # bf16 feature read (kernel is HBM-bound); 1/P plane-mean folded into w1;
    # sigma head concatenated onto the rgb head.
    feats = sampled_features.astype(jnp.bfloat16)
    w1_k = (w1.astype(jnp.float32) / float(P)).astype(jnp.bfloat16)       # (C, H)
    b1_k = b1.astype(jnp.float32).reshape(1, H)
    w23 = jnp.concatenate([w2, w3], axis=1).astype(jnp.float32)           # (H, out_dim+1)
    b23 = jnp.concatenate([b2.reshape(1, -1), b3.reshape(1, -1)],
                          axis=1).astype(jnp.float32)                     # (1, out_dim+1)

    # --- tile-size / VMEM budgeting (per generation: v7x has 64 MiB VMEM) ---
    feat_bytes = 2                                   # bf16
    out_bytes = jnp.dtype(out_dtype).itemsize
    # double-buffered feature + output tiles, plus f32 intermediates (acc, h, lin)
    per_row_bytes = (2 * P * C * feat_bytes
                     + 2 * out_width * out_bytes
                     + 3 * H * 4)
    try:
        vmem_cap = int(getattr(pltpu.get_tpu_info(), "vmem_capacity_bytes",
                               64 * 1024 * 1024))
    except Exception:
        vmem_cap = 64 * 1024 * 1024                  # v7x-safe fallback
    weights_bytes = (w1_k.size * 2 + b1_k.size * 4 + w23.size * 4 + b23.size * 4)
    vmem_budget = max(int(0.45 * vmem_cap) - weights_bytes, 4 * 1024 * 1024)

    TM = _pick_tile_m(M, per_row_bytes, vmem_budget, max_tile=max_tile_m)
    grid = (N, max(M // TM, 1))

    vmem_limit = int(min(max(2 * (TM * per_row_bytes + weights_bytes) + 2 * 1024 * 1024,
                             32 * 1024 * 1024),
                         int(0.9 * vmem_cap)))

    kernel = functools.partial(_osg_decoder_kernel, sigma_act=sigma_act, out_dim=out_dim)

    out = pl.pallas_call(
        kernel,
        out_shape=jax.ShapeDtypeStruct((N, M, out_width), out_dtype),
        grid_spec=pltpu.PrefetchScalarGridSpec(
            num_scalar_prefetch=0,
            grid=grid,
            in_specs=[
                pl.BlockSpec((1, P, TM, C), lambda n, m: (n, 0, m, 0)),   # features
                pl.BlockSpec((C, H), lambda n, m: (0, 0)),                # layer 1 W
                pl.BlockSpec((1, H), lambda n, m: (0, 0)),                # layer 1 b
                pl.BlockSpec((H, out_width), lambda n, m: (0, 0)),        # fused head W
                pl.BlockSpec((1, out_width), lambda n, m: (0, 0)),        # fused head b
            ],
            out_specs=pl.BlockSpec((1, TM, out_width), lambda n, m: (n, m, 0)),
        ),
        compiler_params=pltpu.CompilerParams(
            dimension_semantics=("parallel", "parallel"),
            vmem_limit_bytes=vmem_limit,
        ),
    )(feats, w1_k, b1_k, w23, b23)

    out = out.reshape(N * M, out_width)
    return {"rgb": out[:, :out_dim], "sigma": out[:, out_dim:]}


def init_params(key, n_features, hidden_dim, out_dim, lr_mul):
    """Deterministic init mirroring FullyConnectedLayer + the zero-init of sigma_out.
    Weights are returned pre-transposed to (in, out) with the lr/weight gains folded in."""
    k1, k2 = jax.random.split(key)

    # FC1: raw weight ~ randn(out,in)/lr_mul ; effective = raw * lr_mul/sqrt(in)
    w1_raw = jax.random.normal(k1, (hidden_dim, n_features), jnp.float32) / lr_mul
    b1_raw = jnp.zeros((hidden_dim,), jnp.float32)
    w1 = (w1_raw * (lr_mul / jnp.sqrt(float(n_features)))).T           # (C, H)
    b1 = (b1_raw * lr_mul).reshape(1, hidden_dim)

    # rgb_out
    w2_raw = jax.random.normal(k2, (out_dim, hidden_dim), jnp.float32) / lr_mul
    b2_raw = jnp.zeros((out_dim,), jnp.float32)
    w2 = (w2_raw * (lr_mul / jnp.sqrt(float(hidden_dim)))).T           # (H, out_dim)
    b2 = (b2_raw * lr_mul).reshape(1, out_dim)

    # sigma_out: explicitly zeroed in OSGDecoder.__init__
    w3 = jnp.zeros((hidden_dim, 1), jnp.float32)
    b3 = jnp.zeros((1, 1), jnp.float32)

    return (w1, b1, w2, b2, w3, b3)


def _reference(sampled_features, params, sigma_act="linear"):
    """Pure-JAX f32 reference of the PyTorch forward."""
    w1, b1, w2, b2, w3, b3 = params
    x = sampled_features.mean(axis=1)
    N, M, C = x.shape
    x = x.reshape(N * M, C)
    h = jax.nn.softplus(x @ w1 + b1)
    rgb = jax.nn.sigmoid(h @ w2 + b2) * (1.0 + 2.0 * 0.001) - 0.001
    sigma = h @ w3 + b3
    if sigma_act == "softplus":
        sigma = jax.nn.softplus(sigma)
    return {"rgb": rgb, "sigma": sigma}


if __name__ == "__main__":
    # Small, module-consistent shapes:
    #   N=2 batches, n_planes=3, M=64 samples per batch, n_features=32,
    #   hidden_dim=64 (fixed by the module), decoder_output_dim=32, decoder_lr_mul=1.0
    N, P, M, C = 2, 3, 64, 32
    HIDDEN, OUT_DIM, LR_MUL = 64, 32, 1.0
    SIGMA_ACT = "linear"   # options['sigma_act']

    key = jax.random.PRNGKey(0)
    k_feat, k_param = jax.random.split(key)
    sampled_features = jax.random.normal(k_feat, (N, P, M, C), jnp.float32)
    ray_directions = jax.random.normal(key, (N, M, 3), jnp.float32)  # unused, as in the module

    params = init_params(k_param, C, HIDDEN, OUT_DIM, LR_MUL)

    out = osg_decoder_forward(sampled_features, params, sigma_act=SIGMA_ACT)
    jax.block_until_ready(out)

    ref = _reference(sampled_features, params, SIGMA_ACT)
    assert out["rgb"].shape == (N * M, OUT_DIM) and out["sigma"].shape == (N * M, 1)
    # Tolerance loosened vs the f32 reference because features/W1 run in bf16 on the MXU.
    assert jnp.allclose(out["rgb"], ref["rgb"], atol=2e-2, rtol=0.0), \
        float(jnp.max(jnp.abs(out["rgb"] - ref["rgb"])))
    assert jnp.allclose(out["sigma"], ref["sigma"], atol=2e-2, rtol=0.0)

    print("KERNEL_OK")
</pallas_src>

<mosaic_0001>
module attributes {stable_mosaic.version = 11 : i64} {
  func.func @_osg_decoder_kernel(%arg0: i32, %arg1: i32, %arg2: memref<1x3x64x32xbf16, #tpu.memory_space<vmem>>, %arg3: memref<32x64xbf16, #tpu.memory_space<vmem>>, %arg4: memref<1x64xf32, #tpu.memory_space<vmem>>, %arg5: memref<64x33xf32, #tpu.memory_space<vmem>>, %arg6: memref<1x33xf32, #tpu.memory_space<vmem>>, %arg7: memref<1x64x33xf32, #tpu.memory_space<vmem>>) attributes {dimension_semantics = [#tpu.dimension_semantics<parallel>, #tpu.dimension_semantics<parallel>], iteration_bounds = array<i64: 2, 1>, scalar_prefetch = 0 : i64, scratch_operands = 0 : i64, tpu.core_type = #tpu.core_type<tc>, window_params = [{transform_indices = @transform_0, window_bounds = array<i64: 1, 3, 64, 32>}, {pipeline_mode = #tpu.pipeline_mode<synchronous>, transform_indices = @transform_1, window_bounds = array<i64: 32, 64>}, {pipeline_mode = #tpu.pipeline_mode<synchronous>, transform_indices = @transform_2, window_bounds = array<i64: 1, 64>}, {pipeline_mode = #tpu.pipeline_mode<synchronous>, transform_indices = @transform_3, window_bounds = array<i64: 64, 33>}, {pipeline_mode = #tpu.pipeline_mode<synchronous>, transform_indices = @transform_4, window_bounds = array<i64: 1, 33>}, {transform_indices = @transform_5, window_bounds = array<i64: 1, 64, 33>}]} {
    %c0 = arith.constant 0 : index
    %c0_0 = arith.constant 0 : index
    %c0_1 = arith.constant 0 : index
    %c0_2 = arith.constant 0 : index
    %0 = vector.load %arg2[%c0, %c0_0, %c0_1, %c0_2] : memref<1x3x64x32xbf16, #tpu.memory_space<vmem>>, vector<1x1x64x32xbf16>
    %1 = vector.shape_cast %0 : vector<1x1x64x32xbf16> to vector<64x32xbf16>
    %c0_3 = arith.constant 0 : index
    %c0_4 = arith.constant 0 : index
    %2 = vector.load %arg3[%c0_3, %c0_4] : memref<32x64xbf16, #tpu.memory_space<vmem>>, vector<32x64xbf16>
    %cst = arith.constant dense<0.000000e+00> : vector<64x64xf32>
    %3 = tpu.matmul %1, %2, %cst {dimension_numbers = #tpu.dot_dimension_numbers<[1], [0], [0], [1], [0, 0, 1, 1], [], []>} : vector<64x32xbf16>, vector<32x64xbf16>, vector<64x64xf32> -> vector<64x64xf32>
    %c0_5 = arith.constant 0 : index
    %c1 = arith.constant 1 : index
    %c0_6 = arith.constant 0 : index
    %c0_7 = arith.constant 0 : index
    %4 = vector.load %arg2[%c0_5, %c1, %c0_6, %c0_7] : memref<1x3x64x32xbf16, #tpu.memory_space<vmem>>, vector<1x1x64x32xbf16>
    %5 = vector.shape_cast %4 : vector<1x1x64x32xbf16> to vector<64x32xbf16>
    %c0_8 = arith.constant 0 : index
    %c0_9 = arith.constant 0 : index
    %6 = vector.load %arg3[%c0_8, %c0_9] : memref<32x64xbf16, #tpu.memory_space<vmem>>, vector<32x64xbf16>
    %cst_10 = arith.constant dense<0.000000e+00> : vector<64x64xf32>
    %7 = tpu.matmul %5, %6, %cst_10 {dimension_numbers = #tpu.dot_dimension_numbers<[1], [0], [0], [1], [0, 0, 1, 1], [], []>} : vector<64x32xbf16>, vector<32x64xbf16>, vector<64x64xf32> -> vector<64x64xf32>
    %8 = arith.addf %3, %7 : vector<64x64xf32>
    %c0_11 = arith.constant 0 : index
    %c2 = arith.constant 2 : index
    %c0_12 = arith.constant 0 : index
    %c0_13 = arith.constant 0 : index
    %9 = vector.load %arg2[%c0_11, %c2, %c0_12, %c0_13] : memref<1x3x64x32xbf16, #tpu.memory_space<vmem>>, vector<1x1x64x32xbf16>
    %10 = vector.shape_cast %9 : vector<1x1x64x32xbf16> to vector<64x32xbf16>
    %c0_14 = arith.constant 0 : index
    %c0_15 = arith.constant 0 : index
    %11 = vector.load %arg3[%c0_14, %c0_15] : memref<32x64xbf16, #tpu.memory_space<vmem>>, vector<32x64xbf16>
    %cst_16 = arith.constant dense<0.000000e+00> : vector<64x64xf32>
    %12 = tpu.matmul %10, %11, %cst_16 {dimension_numbers = #tpu.dot_dimension_numbers<[1], [0], [0], [1], [0, 0, 1, 1], [], []>} : vector<64x32xbf16>, vector<32x64xbf16>, vector<64x64xf32> -> vector<64x64xf32>
    %13 = arith.addf %8, %12 : vector<64x64xf32>
    %c0_17 = arith.constant 0 : index
    %c0_18 = arith.constant 0 : index
    %14 = vector.load %arg4[%c0_17, %c0_18] : memref<1x64xf32, #tpu.memory_space<vmem>>, vector<1x64xf32>
    %15 = vector.broadcast %14 : vector<1x64xf32> to vector<64x64xf32>
    %16 = arith.addf %13, %15 : vector<64x64xf32>
    %cst_19 = arith.constant 0.000000e+00 : f32
    %17 = vector.broadcast %cst_19 : f32 to vector<64x64xf32>
    %18 = arith.maximumf %16, %17 : vector<64x64xf32>
    %19 = vector.broadcast %cst_19 : f32 to vector<64x64xf32>
    %20 = arith.subf %16, %19 : vector<64x64xf32>
    %21 = arith.cmpf one, %20, %20 : vector<64x64xf32>
    %22 = vector.broadcast %cst_19 : f32 to vector<64x64xf32>
    %23 = arith.addf %16, %22 : vector<64x64xf32>
    %24 = math.absf %20 : vector<64x64xf32>
    %cst_20 = arith.constant 0.000000e+00 : f32
    %25 = vector.broadcast %cst_20 : f32 to vector<64x64xf32>
    %26 = arith.subf %25, %24 : vector<64x64xf32>
    %27 = math.exp %26 : vector<64x64xf32>
    %28 = math.log1p %27 : vector<64x64xf32>
    %29 = arith.addf %18, %28 : vector<64x64xf32>
    %30 = arith.select %21, %23, %29 : vector<64x64xi1>, vector<64x64xf32>
    %c0_21 = arith.constant 0 : index
    %c0_22 = arith.constant 0 : index
    %31 = vector.load %arg5[%c0_21, %c0_22] : memref<64x33xf32, #tpu.memory_space<vmem>>, vector<64x33xf32>
    %cst_23 = arith.constant dense<0.000000e+00> : vector<64x33xf32>
    %32 = tpu.matmul %30, %31, %cst_23 {dimension_numbers = #tpu.dot_dimension_numbers<[1], [0], [0], [1], [0, 0, 1, 1], [], []>} : vector<64x64xf32>, vector<64x33xf32>, vector<64x33xf32> -> vector<64x33xf32>
    %c0_24 = arith.constant 0 : index
    %c0_25 = arith.constant 0 : index
    %33 = vector.load %arg6[%c0_24, %c0_25] : memref<1x33xf32, #tpu.memory_space<vmem>>, vector<1x33xf32>
    %34 = vector.broadcast %33 : vector<1x33xf32> to vector<64x33xf32>
    %35 = arith.addf %32, %34 : vector<64x33xf32>
    %36 = arith.negf %35 : vector<64x33xf32>
    %37 = math.exp %36 : vector<64x33xf32>
    %cst_26 = arith.constant 1.000000e+00 : f32
    %38 = vector.broadcast %cst_26 : f32 to vector<64x33xf32>
    %39 = arith.addf %38, %37 : vector<64x33xf32>
    %40 = arith.divf %38, %39 : vector<64x33xf32>
    %cst_27 = arith.constant 1.002000e+00 : f32
    %41 = vector.broadcast %cst_27 : f32 to vector<64x33xf32>
    %42 = arith.mulf %40, %41 : vector<64x33xf32>
    %cst_28 = arith.constant 1.000000e-03 : f32
    %43 = vector.broadcast %cst_28 : f32 to vector<64x33xf32>
    %44 = arith.subf %42, %43 : vector<64x33xf32>
    %45 = tpu.iota {dimensions = array<i32: 1>} : vector<64x33xi32>
    %c32_i32 = arith.constant 32 : i32
    %46 = vector.broadcast %c32_i32 : i32 to vector<64x33xi32>
    %47 = arith.cmpi slt, %45, %46 : vector<64x33xi32>
    %48 = arith.select %47, %44, %35 : vector<64x33xi1>, vector<64x33xf32>
    %c0_29 = arith.constant 0 : index
    %c0_30 = arith.constant 0 : index
    %c0_31 = arith.constant 0 : index
    %49 = vector.load %arg7[%c0_29, %c0_30, %c0_31] : memref<1x64x33xf32, #tpu.memory_space<vmem>>, vector<1x64x33xf32>
    %50 = vector.shape_cast %49 : vector<1x64x33xf32> to vector<64x33xf32>
    %51 = vector.shape_cast %48 : vector<64x33xf32> to vector<1x64x33xf32>
    tpu.vector_store %arg7[%c0_29, %c0_30, %c0_31], %51 {strides = array<i32>} : memref<1x64x33xf32, #tpu.memory_space<vmem>>, vector<1x64x33xf32>,
    return
  }
  func.func @transform_0(%arg0: i32, %arg1: i32) -> (i32, i32, i32, i32) {
    %c0_i32 = arith.constant 0 : i32
    %c0_i32_0 = arith.constant 0 : i32
    %c0_i32_1 = arith.constant 0 : i32
    return %arg0, %c0_i32, %arg1, %c0_i32_0 : i32, i32, i32, i32
  }
  func.func @transform_1(%arg0: i32, %arg1: i32) -> (i32, i32) {
    %c0_i32 = arith.constant 0 : i32
    %c0_i32_0 = arith.constant 0 : i32
    %c0_i32_1 = arith.constant 0 : i32
    return %c0_i32, %c0_i32_0 : i32, i32
  }
  func.func @transform_2(%arg0: i32, %arg1: i32) -> (i32, i32) {
    %c0_i32 = arith.constant 0 : i32
    %c0_i32_0 = arith.constant 0 : i32
    %c0_i32_1 = arith.constant 0 : i32
    return %c0_i32, %c0_i32_0 : i32, i32
  }
  func.func @transform_3(%arg0: i32, %arg1: i32) -> (i32, i32) {
    %c0_i32 = arith.constant 0 : i32
    %c0_i32_0 = arith.constant 0 : i32
    %c0_i32_1 = arith.constant 0 : i32
    return %c0_i32, %c0_i32_0 : i32, i32
  }
  func.func @transform_4(%arg0: i32, %arg1: i32) -> (i32, i32) {
    %c0_i32 = arith.constant 0 : i32
    %c0_i32_0 = arith.constant 0 : i32
    %c0_i32_1 = arith.constant 0 : i32
    return %c0_i32, %c0_i32_0 : i32, i32
  }
  func.func @transform_5(%arg0: i32, %arg1: i32) -> (i32, i32, i32) {
    %c0_i32 = arith.constant 0 : i32
    %c0_i32_0 = arith.constant 0 : i32
    return %arg0, %arg1, %c0_i32 : i32, i32, i32
  }
}

</mosaic_0001>

<llo_original>
// kernel: tpu_custom_call.1
$region0: #{tpu_custom_call.1}
  #allocation0 [shape = 'u32[]', space=smem, size = 0x4, offset = 0x4, fixed_abs, tag = 'smem constant byte address 0x4 - core index']
  #allocation1 [shape = 'u32[144,128]{1,0:T(1,128)}', space=vmem, size = 0x12000, scoped, tag = 'internal scratch']
  %s0 = inlined_call_operand.vmem [shape: bf16[2,3,64,32], index: 0, kind: input, shape index: {}]
  %s1 = inlined_call_operand.vmem [shape: bf16[32,64], index: 1, kind: input, shape index: {}]
  %s2 = inlined_call_operand.vmem [shape: f32[1,64], index: 2, kind: input, shape index: {}]
  %s3 = inlined_call_operand.vmem [shape: f32[64,33], index: 3, kind: input, shape index: {}]
  %s4 = inlined_call_operand.vmem [shape: f32[1,33], index: 4, kind: input, shape index: {}]
  %s5 = inlined_call_operand.vmem [shape: f32[2,64,33], index: 5, kind: output, shape index: {}]
  %s6 = sld [smem:[#allocation0]]
  $region53: #{tpu_custom_call.1} parent=0
    _
  %s8 = ssub.s32 1, %s6
  %s9 = scalar_select 0, %s8, %s6
  loop: start=0, step=1, limit=4
  $region2: #{tpu_custom_call.1} parent=0 // loop_pre_header
    _
  $region3: #{tpu_custom_call.1} parent=0 // loop_header
    %s11 = sphi 0, %s15
    %p12 = scmp.ge.s32.totalorder %s11, 4
    %s18 = sphi 0, %s30
    %s19 = sphi 0, %s26
    %s20 = sphi 0, %s18
    %s21 = sphi 0, %s19
    %s22 = sphi 0, %s20
    %s23 = sphi 0, %s21
    %s35 = sphi 0, %s37
    %s38 = sphi 0, %s35
    %s39 = sphi 0, %s38
    %s55 = sphi 0, %s39
    %s59 = sphi 0, %s59
    %s61 = sphi 0, %s59
    %s62 = sphi 0, %s61
    %s76 = sphi 0, %s62
    %s80 = sphi 0, %s80
    %s82 = sphi 0, %s80
    %s83 = sphi 0, %s82
    %s97 = sphi 0, %s83
    %s101 = sphi 0, %s101
    %s103 = sphi 0, %s101
    %s104 = sphi 0, %s103
    %s118 = sphi 0, %s104
    %s122 = sphi 0, %s122
    %s124 = sphi 0, %s122
    %s125 = sphi 0, %s124
    %s139 = sphi 0, %s125
    %s147 = sphi 0, %s149
    %s150 = sphi 0, %s147
    %s151 = sphi 0, %s150
    %s167 = sphi 0, %s151
  $region4: #{tpu_custom_call.1} parent=0 // loop_header_branch
    %14 = sbr.rel (%p12) target = $region8
  $region5: #{tpu_custom_call.1} parent=0 // loop_body
    %s16 = ssub.s32 %s11, 1
    %s17 = ssub.s32 %s11, 2
    %s24 = sadd.s32 1, %s19
    %p25 = scmp.ge.s32.totalorder %s24, 1
    %s26 = scalar_select %p25, 0, %s24
    %s27 = sadd.s32 1, %s18
    %s28 = scalar_select %p25, %s27, %s18
    %p29 = scmp.ge.s32.totalorder %s28, 2
    %s30 = scalar_select %p29, 0, %s28
    %s31 = ssub.s32 %s18, %s30
    %s32 = ssub.s32 %s19, %s26
    %s33 = sor.u32 %s31, %s32
    %p34 = scmp.eq.s32.totalorder %s33, 0
    %s36 = sadd.s32 %s35, 1
    %s37 = scalar_select %p34, %s35, %s36
    %p40 = pneg %p34
    %p41 = scmp.eq.s32.totalorder %s11, 1
    %p42 = por %p40, %p41
    %p43 = scmp.ne.s32.totalorder %s35, %s38
    %p44 = scmp.eq.s32.totalorder %s11, 0
    %p45 = por %p43, %p44
    %p46 = scmp.ne.s32.totalorder %s35, %s38
    %p47 = scmp.eq.s32.totalorder %s16, 1
    %p48 = por %p46, %p47
    %p49 = scmp.ne.s32.totalorder %s38, %s39
    %p50 = scmp.eq.s32.totalorder %s16, 0
    %p51 = por %p49, %p50
    %p52 = scmp.ne.s32.totalorder %s38, %s39
    %p53 = scmp.eq.s32.totalorder %s17, 1
    %p54 = por %p52, %p53
    %p56 = scmp.ne.s32.totalorder %s39, %s55
    %p57 = scmp.eq.s32.totalorder %s17, 0
    %p58 = por %p56, %p57
    %s60 = sadd.s32 %s59, 1
    %p63 = scmp.eq.s32.totalorder %s11, 1
    %p64 = scmp.ne.s32.totalorder %s59, %s61
    %p65 = scmp.eq.s32.totalorder %s11, 0
    %p66 = por %p64, %p65
    %p67 = scmp.ne.s32.totalorder %s59, %s61
    %p68 = scmp.eq.s32.totalorder %s16, 1
    %p69 = por %p67, %p68
    %p70 = scmp.ne.s32.totalorder %s61, %s62
    %p71 = scmp.eq.s32.totalorder %s16, 0
    %p72 = por %p70, %p71
    %p73 = scmp.ne.s32.totalorder %s61, %s62
    %p74 = scmp.eq.s32.totalorder %s17, 1
    %p75 = por %p73, %p74
    %p77 = scmp.ne.s32.totalorder %s62, %s76
    %p78 = scmp.eq.s32.totalorder %s17, 0
    %p79 = por %p77, %p78
    %s81 = sadd.s32 %s80, 1
    %p84 = scmp.eq.s32.totalorder %s11, 1
    %p85 = scmp.ne.s32.totalorder %s80, %s82
    %p86 = scmp.eq.s32.totalorder %s11, 0
    %p87 = por %p85, %p86
    %p88 = scmp.ne.s32.totalorder %s80, %s82
    %p89 = scmp.eq.s32.totalorder %s16, 1
    %p90 = por %p88, %p89
    %p91 = scmp.ne.s32.totalorder %s82, %s83
    %p92 = scmp.eq.s32.totalorder %s16, 0
    %p93 = por %p91, %p92
    %p94 = scmp.ne.s32.totalorder %s82, %s83
    %p95 = scmp.eq.s32.totalorder %s17, 1
    %p96 = por %p94, %p95
    %p98 = scmp.ne.s32.totalorder %s83, %s97
    %p99 = scmp.eq.s32.totalorder %s17, 0
    %p100 = por %p98, %p99
    %s102 = sadd.s32 %s101, 1
    %p105 = scmp.eq.s32.totalorder %s11, 1
    %p106 = scmp.ne.s32.totalorder %s101, %s103
    %p107 = scmp.eq.s32.totalorder %s11, 0
    %p108 = por %p106, %p107
    %p109 = scmp.ne.s32.totalorder %s101, %s103
    %p110 = scmp.eq.s32.totalorder %s16, 1
    %p111 = por %p109, %p110
    %p112 = scmp.ne.s32.totalorder %s103, %s104
    %p113 = scmp.eq.s32.totalorder %s16, 0
    %p114 = por %p112, %p113
    %p115 = scmp.ne.s32.totalorder %s103, %s104
    %p116 = scmp.eq.s32.totalorder %s17, 1
    %p117 = por %p115, %p116
    %p119 = scmp.ne.s32.totalorder %s104, %s118
    %p120 = scmp.eq.s32.totalorder %s17, 0
    %p121 = por %p119, %p120
    %s123 = sadd.s32 %s122, 1
    %p126 = scmp.eq.s32.totalorder %s11, 1
    %p127 = scmp.ne.s32.totalorder %s122, %s124
    %p128 = scmp.eq.s32.totalorder %s11, 0
    %p129 = por %p127, %p128
    %p130 = scmp.ne.s32.totalorder %s122, %s124
    %p131 = scmp.eq.s32.totalorder %s16, 1
    %p132 = por %p130, %p131
    %p133 = scmp.ne.s32.totalorder %s124, %s125
    %p134 = scmp.eq.s32.totalorder %s16, 0
    %p135 = por %p133, %p134
    %p136 = scmp.ne.s32.totalorder %s124, %s125
    %p137 = scmp.eq.s32.totalorder %s17, 1
    %p138 = por %p136, %p137
    %p140 = scmp.ne.s32.totalorder %s125, %s139
    %p141 = scmp.eq.s32.totalorder %s17, 0
    %p142 = por %p140, %p141
    %s143 = ssub.s32 %s18, %s30
    %s144 = ssub.s32 %s19, %s26
    %s145 = sor.u32 %s143, %s144
    %p146 = scmp.eq.s32.totalorder %s145, 0
    %s148 = sadd.s32 %s147, 1
    %s149 = scalar_select %p146, %s147, %s148
    %p152 = pneg %p146
    %p153 = scmp.eq.s32.totalorder %s11, 1
    %p154 = por %p152, %p153
    %p155 = scmp.ne.s32.totalorder %s147, %s150
    %p156 = scmp.eq.s32.totalorder %s11, 0
    %p157 = por %p155, %p156
    %p158 = scmp.ne.s32.totalorder %s147, %s150
    %p159 = scmp.eq.s32.totalorder %s16, 1
    %p160 = por %p158, %p159
    %p161 = scmp.ne.s32.totalorder %s150, %s151
    %p162 = scmp.eq.s32.totalorder %s16, 0
    %p163 = por %p161, %p162
    %p164 = scmp.ne.s32.totalorder %s150, %s151
    %p165 = scmp.eq.s32.totalorder %s17, 1
    %p166 = por %p164, %p165
    %p168 = scmp.ne.s32.totalorder %s151, %s167
    %p169 = scmp.eq.s32.totalorder %s17, 0
    %p170 = por %p168, %p169
    %p171 = scmp.le.s32.totalorder 1, %s11
    %p172 = scmp.lt.s32.totalorder %s11, 3
    %p173 = pnand %p171, %p172
    %p174 = pneg %p173
    // Predicated region
    $region9: #{tpu_custom_call.1} parent=5 // pred_check
      _
    $region10: #{tpu_custom_call.1} parent=5 // pred_check_branch
      %176 = sbr.rel (%p173) target = $region12
    $region11: #{tpu_custom_call.1} parent=5 // pred_region
      %s177 = ssub.s32 %s11, 1
      // Predicated region
      $region13: #{tpu_custom_call.1} parent=11 // pred_check
        %p178 = pneg %p72
      $region14: #{tpu_custom_call.1} parent=11 // pred_check_branch
        %180 = sbr.rel (%p178) target = $region16
      $region15: #{tpu_custom_call.1} parent=11 // pred_region
        _
      $region16: #{tpu_custom_call.1} parent=11 // pred_fallthru
        _
      // Predicated region
      $region17: #{tpu_custom_call.1} parent=11 // pred_check
        %p181 = pneg %p93
      $region18: #{tpu_custom_call.1} parent=11 // pred_check_branch
        %183 = sbr.rel (%p181) target = $region20
      $region19: #{tpu_custom_call.1} parent=11 // pred_region
        _
      $region20: #{tpu_custom_call.1} parent=11 // pred_fallthru
        _
      // Predicated region
      $region21: #{tpu_custom_call.1} parent=11 // pred_check
        %p184 = pneg %p114
      $region22: #{tpu_custom_call.1} parent=11 // pred_check_branch
        %186 = sbr.rel (%p184) target = $region24
      $region23: #{tpu_custom_call.1} parent=11 // pred_region
        _
      $region24: #{tpu_custom_call.1} parent=11 // pred_fallthru
        _
      // Predicated region
      $region25: #{tpu_custom_call.1} parent=11 // pred_check
        %p187 = pneg %p135
      $region26: #{tpu_custom_call.1} parent=11 // pred_check_branch
        %189 = sbr.rel (%p187) target = $region28
      $region27: #{tpu_custom_call.1} parent=11 // pred_region
        _
      $region28: #{tpu_custom_call.1} parent=11 // pred_fallthru
        _
    $region12: #{tpu_custom_call.1} parent=5 // pred_fallthru
      _
    %p190 = scmp.lt.s32.totalorder %s11, 2
    // Predicated region
    $region29: #{tpu_custom_call.1} parent=5 // pred_check
      %p191 = pneg %p190
    $region30: #{tpu_custom_call.1} parent=5 // pred_check_branch
      %193 = sbr.rel (%p191) target = $region32
    $region31: #{tpu_custom_call.1} parent=5 // pred_region
      // Predicated region
      $region33: #{tpu_custom_call.1} parent=31 // pred_check
        %p194 = pneg %p45
      $region34: #{tpu_custom_call.1} parent=31 // pred_check_branch
        %196 = sbr.rel (%p194) target = $region36
      $region35: #{tpu_custom_call.1} parent=31 // pred_region
        %s197 = smul.u32 8, %s19
        %p198 = scmp.lt.s32.totalorder %s18, 1
        %s199 = scalar_select %p198, %s18, 1
        %p200 = scmp.lt.s32.totalorder %s197, 7
        %s201 = scalar_select %p200, %s197, 7
        %s202 = smul.addr %s199, 24
        %s203 = sadd.s32 %s201, %s202
        %s204 = smul.addr %s203, 4
        %s205 = scalar_lea.vmem %s0, %s204
        %s206 = smul.u32 8, %s19
      $region36: #{tpu_custom_call.1} parent=31 // pred_fallthru
        _
    $region32: #{tpu_custom_call.1} parent=5 // pred_fallthru
      _
    %p207 = scmp.le.s32.totalorder 1, %s11
    %p208 = scmp.lt.s32.totalorder %s11, 3
    %p209 = pnand %p207, %p208
    %p210 = pneg %p209
    // Predicated region
    $region37: #{tpu_custom_call.1} parent=5 // pred_check
      _
    $region38: #{tpu_custom_call.1} parent=5 // pred_check_branch
      %212 = sbr.rel (%p209) target = $region40
    $region39: #{tpu_custom_call.1} parent=5 // pred_region
      %s213 = ssub.s32 %s11, 1
      %s214 = smul.u32 8, %s21
      %p215 = scmp.lt.s32.totalorder %s20, 1
      %s216 = scalar_select %p215, %s20, 1
      %p217 = scmp.lt.s32.totalorder %s214, 7
      %s218 = scalar_select %p217, %s214, 7
      %s219 = smul.addr %s216, 24
      %s220 = sadd.s32 %s218, %s219
      %s221 = smul.addr %s220, 4
      %s222 = scalar_lea.vmem %s0, %s221
      %p223 = pneg %p51
      %p224 = pneg %p48
      %p225 = pneg %p72
      %p226 = pneg %p69
      %p227 = pneg %p93
      %p228 = pneg %p90
      %p229 = pneg %p114
      %p230 = pneg %p111
      %p231 = pneg %p135
      %p232 = pneg %p132
      %p233 = pneg %p163
      %p234 = pneg %p160
      %s235 = smul.u32 8, %s21
      %p236 = scmp.lt.s32.totalorder %s20, 1
      %s237 = scalar_select %p236, %s20, 1
      %p238 = scmp.lt.s32.totalorder %s235, 7
      %s239 = scalar_select %p238, %s235, 7
      %s240 = smul.addr %s237, 8
      %s241 = sadd.s32 %s239, %s240
      %s242 = smul.addr %s241, 8
      %s243 = scalar_lea.vmem %s5, %s242
      %s244 = smul.u32 8, %s21
      %p245 = scmp.lt.s32.totalorder %s20, 1
      %s246 = scalar_select %p245, %s20, 1
      %p247 = scmp.lt.s32.totalorder %s244, 7
      %s248 = scalar_select %p247, %s244, 7
      %s249 = smul.addr %s246, 24
      %s250 = sadd.s32 %s248, %s249
      %s251 = smul.addr %s250, 4
      %s252 = scalar_lea.vmem %s0, %s251
      %s253 = smul.u32 8, %s21
      %s254 = smul.u32 8, %s21
      %p255 = scmp.lt.s32.totalorder %s20, 1
      %s256 = scalar_select %p255, %s20, 1
      %p257 = scmp.lt.s32.totalorder %s254, 7
      %s258 = scalar_select %p257, %s254, 7
      %s259 = smul.addr %s256, 8
      %s260 = sadd.s32 %s258, %s259
      %s261 = smul.addr %s260, 8
      %s262 = scalar_lea.vmem %s5, %s261
      %s263 = smul.u32 8, %s21
      %v265 = vld [vmem:[%s252] sm:$0xf]
      %v266 = vld [vmem:[%s252 + $0x4] sm:$0xf]
      %v267 = vld [vmem:[%s252 + $0x8] sm:$0xf]
      %v268 = vld [vmem:[%s252 + $0xc] sm:$0xf]
      %v269 = vld [vmem:[%s252 + $0x10] sm:$0xf]
      %v270 = vld [vmem:[%s252 + $0x14] sm:$0xf]
      %v271 = vld [vmem:[%s252 + $0x18] sm:$0xf]
      %v272 = vld [vmem:[%s252 + $0x1c] sm:$0xf]
      %v273 = vld [vmem:[%s1] sm:$0xf]
      %v274 = vld [vmem:[%s1 + $0x4] sm:$0xf]
      %v275 = vld [vmem:[%s1 + $0x8] sm:$0xf]
      %v276 = vld [vmem:[%s1 + $0xc] sm:$0xf]
      %s277 = scalar_lea.vmem %s252, 32
      %v278 = vld [vmem:[%s277] sm:$0xf]
      %v279 = vld [vmem:[%s277 + $0x4] sm:$0xf]
      %v280 = vld [vmem:[%s277 + $0x8] sm:$0xf]
      %v281 = vld [vmem:[%s277 + $0xc] sm:$0xf]
      %v282 = vld [vmem:[%s277 + $0x10] sm:$0xf]
      %v283 = vld [vmem:[%s277 + $0x14] sm:$0xf]
      %v284 = vld [vmem:[%s277 + $0x18] sm:$0xf]
      %v285 = vld [vmem:[%s277 + $0x1c] sm:$0xf]
      %v294 = vunpack.c.l.b16 %v278
      %v295 = vunpack.c.l.b16 %v279
      %v296 = vunpack.c.l.b16 %v280
      %v297 = vunpack.c.l.b16 %v281
      %v298 = vunpack.c.l.b16 %v282
      %v299 = vunpack.c.l.b16 %v283
      %v300 = vunpack.c.l.b16 %v284
      %v301 = vunpack.c.l.b16 %v285
      %v302 = vpack.c.b16 %v295, %v294
      %v303 = vpack.c.b16 %v297, %v296
      %v304 = vpack.c.b16 %v299, %v298
      %v305 = vpack.c.b16 %v301, %v300
      %v310 = vunpack.c.l.b16 %v273
      %v311 = vunpack.c.l.b16 %v274
      %v312 = vunpack.c.l.b16 %v275
      %v313 = vunpack.c.l.b16 %v276
      %v314 = vpack.c.b16 %v311, %v310
      %v315 = vpack.c.b16 %v313, %v312
      %vm318 = vcmask 261120
      %v320 = vsel %vm318, %v302, 0
      %v323 = vsel %vm318, %v303, 0
      %v326 = vsel %vm318, %v304, 0
      %v329 = vsel %vm318, %v305, 0
      %331 = vmatprep.subr.bf16.mxu0 0
      %332 = vmatpush1.bf16.msra.mxu0 %v314
      %333 = vmatprep.subr.bf16.mxu0 0
      %334 = vmatpush1.bf16.msra.mxu0 %v315
      %335 = vmatprep.subr.bf16.mxu0 0
      %336 = vmatpush1.bf16.msra.mxu0 0
      %337 = vmatprep.subr.bf16.mxu0 0
      %338 = vmatpush1.bf16.msra.mxu0 0
      %339 = vmatprep.subr.bf16.mxu0 0
      %340 = vmatpush1.bf16.msra.mxu0 0
      %341 = vmatprep.subr.bf16.mxu0 0
      %342 = vmatpush1.bf16.msra.mxu0 0
      %343 = vmatprep.subr.bf16.mxu0 0
      %344 = vmatpush1.bf16.msra.mxu0 0
      %345 = vmatprep.subr.bf16.mxu0 0
      %346 = vmatpush1.bf16.msra.mxu0 0
      %347 = vmatprep.subr.bf16.mxu0 0
      %348 = vmatpush1.bf16.msra.mxu0 0
      %349 = vmatprep.subr.bf16.mxu0 0
      %350 = vmatpush1.bf16.msra.mxu0 0
      %351 = vmatprep.subr.bf16.mxu0 0
      %352 = vmatpush1.bf16.msra.mxu0 0
      %353 = vmatprep.subr.bf16.mxu0 0
      %354 = vmatpush1.bf16.msra.mxu0 0
      %355 = vmatprep.subr.bf16.mxu0 0
      %356 = vmatpush1.bf16.msra.mxu0 0
      %357 = vmatprep.subr.bf16.mxu0 0
      %358 = vmatpush1.bf16.msra.mxu0 0
      %359 = vmatprep.subr.bf16.mxu0 0
      %360 = vmatpush1.bf16.msra.mxu0 0
      %361 = vmatprep.subr.bf16.mxu0 0
      %362 = vmatpush1.bf16.msra.mxu0 0
      %363 = vmatprep.mubr.bf16.mxu0 0
      %364 = vmatmul.mubr.bf16.gmra.mrb[0].mxu0 %v320
      %v365 = vpop.f32.mrb[0].mxu0
      %v366 = vadd.f32 0.0, %v365
      %v367 = vpop.f32.mrb[0].mxu0
      %v368 = vpop.f32.mrb[0].mxu0
      %v369 = vadd.f32 0.0, %v368
      %v370 = vpop.f32.mrb[0].mxu0
      %371 = vmatprep.mubr.bf16.mxu0 0
      %372 = vmatmul.mubr.bf16.gmra.mrb[0].mxu0 %v323
      %v373 = vpop.f32.mrb[0].mxu0
      %v374 = vadd.f32 0.0, %v373
      %v375 = vpop.f32.mrb[0].mxu0
      %v376 = vpop.f32.mrb[0].mxu0
      %v377 = vadd.f32 0.0, %v376
      %v378 = vpop.f32.mrb[0].mxu0
      %379 = vmatprep.mubr.bf16.mxu0 0
      %380 = vmatmul.mubr.bf16.gmra.mrb[0].mxu0 %v326
      %v381 = vpop.f32.mrb[0].mxu0
      %v382 = vadd.f32 0.0, %v381
      %v383 = vpop.f32.mrb[0].mxu0
      %v384 = vpop.f32.mrb[0].mxu0
      %v385 = vadd.f32 0.0, %v384
      %v386 = vpop.f32.mrb[0].mxu0
      %387 = vmatprep.mubr.bf16.mxu0 0
      %388 = vmatmul.mubr.bf16.gmra.mrb[0].mxu0 %v329
      %v389 = vpop.f32.mrb[0].mxu0
      %v390 = vadd.f32 0.0, %v389
      %v391 = vpop.f32.mrb[0].mxu0
      %v392 = vpop.f32.mrb[0].mxu0
      %v393 = vadd.f32 0.0, %v392
      %v394 = vpop.f32.mrb[0].mxu0
      %395 = vdwg.mxu0
      %v404 = vunpack.c.l.b16 %v265
      %v405 = vunpack.c.l.b16 %v266
      %v406 = vunpack.c.l.b16 %v267
      %v407 = vunpack.c.l.b16 %v268
      %v408 = vunpack.c.l.b16 %v269
      %v409 = vunpack.c.l.b16 %v270
      %v410 = vunpack.c.l.b16 %v271
      %v411 = vunpack.c.l.b16 %v272
      %v412 = vpack.c.b16 %v405, %v404
      %v413 = vpack.c.b16 %v407, %v406
      %v414 = vpack.c.b16 %v409, %v408
      %v415 = vpack.c.b16 %v411, %v410
      %v417 = vsel %vm318, %v412, 0
      %v420 = vsel %vm318, %v413, 0
      %v423 = vsel %vm318, %v414, 0
      %v426 = vsel %vm318, %v415, 0
      %428 = vmatprep.subr.bf16.mxu0 0
      %429 = vmatpush1.bf16.msra.mxu0 %v314
      %430 = vmatprep.subr.bf16.mxu0 0
      %431 = vmatpush1.bf16.msra.mxu0 %v315
      %432 = vmatprep.subr.bf16.mxu0 0
      %433 = vmatpush1.bf16.msra.mxu0 0
      %434 = vmatprep.subr.bf16.mxu0 0
      %435 = vmatpush1.bf16.msra.mxu0 0
      %436 = vmatprep.subr.bf16.mxu0 0
      %437 = vmatpush1.bf16.msra.mxu0 0
      %438 = vmatprep.subr.bf16.mxu0 0
      %439 = vmatpush1.bf16.msra.mxu0 0
      %440 = vmatprep.subr.bf16.mxu0 0
      %441 = vmatpush1.bf16.msra.mxu0 0
      %442 = vmatprep.subr.bf16.mxu0 0
      %443 = vmatpush1.bf16.msra.mxu0 0
      %444 = vmatprep.subr.bf16.mxu0 0
      %445 = vmatpush1.bf16.msra.mxu0 0
      %446 = vmatprep.subr.bf16.mxu0 0
      %447 = vmatpush1.bf16.msra.mxu0 0
      %448 = vmatprep.subr.bf16.mxu0 0
      %449 = vmatpush1.bf16.msra.mxu0 0
      %450 = vmatprep.subr.bf16.mxu0 0
      %451 = vmatpush1.bf16.msra.mxu0 0
      %452 = vmatprep.subr.bf16.mxu0 0
      %453 = vmatpush1.bf16.msra.mxu0 0
      %454 = vmatprep.subr.bf16.mxu0 0
      %455 = vmatpush1.bf16.msra.mxu0 0
      %456 = vmatprep.subr.bf16.mxu0 0
      %457 = vmatpush1.bf16.msra.mxu0 0
      %458 = vmatprep.subr.bf16.mxu0 0
      %459 = vmatpush1.bf16.msra.mxu0 0
      %460 = vmatprep.mubr.bf16.mxu0 0
      %461 = vmatmul.mubr.bf16.gmra.mrb[0].mxu0 %v417
      %v462 = vpop.f32.mrb[0].mxu0
      %v463 = vadd.f32 %v366, %v462
      %v464 = vpop.f32.mrb[0].mxu0
      %v465 = vpop.f32.mrb[0].mxu0
      %v466 = vadd.f32 %v369, %v465
      %v467 = vpop.f32.mrb[0].mxu0
      %468 = vmatprep.mubr.bf16.mxu0 0
      %469 = vmatmul.mubr.bf16.gmra.mrb[0].mxu0 %v420
      %v470 = vpop.f32.mrb[0].mxu0
      %v471 = vadd.f32 %v374, %v470
      %v472 = vpop.f32.mrb[0].mxu0
      %v473 = vpop.f32.mrb[0].mxu0
      %v474 = vadd.f32 %v377, %v473
      %v475 = vpop.f32.mrb[0].mxu0
      %476 = vmatprep.mubr.bf16.mxu0 0
      %477 = vmatmul.mubr.bf16.gmra.mrb[0].mxu0 %v423
      %v478 = vpop.f32.mrb[0].mxu0
      %v479 = vadd.f32 %v382, %v478
      %v480 = vpop.f32.mrb[0].mxu0
      %v481 = vpop.f32.mrb[0].mxu0
      %v482 = vadd.f32 %v385, %v481
      %v483 = vpop.f32.mrb[0].mxu0
      %484 = vmatprep.mubr.bf16.mxu0 0
      %485 = vmatmul.mubr.bf16.gmra.mrb[0].mxu0 %v426
      %v486 = vpop.f32.mrb[0].mxu0
      %v487 = vadd.f32 %v390, %v486
      %v488 = vpop.f32.mrb[0].mxu0
      %v489 = vpop.f32.mrb[0].mxu0
      %v490 = vadd.f32 %v393, %v489
      %v491 = vpop.f32.mrb[0].mxu0
      %492 = vdwg.mxu0
      %s493 = scalar_lea.vmem %s252, 64
      %v494 = vld [vmem:[%s493] sm:$0xf]
      %v495 = vld [vmem:[%s493 + $0x4] sm:$0xf]
      %v496 = vld [vmem:[%s493 + $0x8] sm:$0xf]
      %v497 = vld [vmem:[%s493 + $0xc] sm:$0xf]
      %v498 = vld [vmem:[%s493 + $0x10] sm:$0xf]
      %v499 = vld [vmem:[%s493 + $0x14] sm:$0xf]
      %v500 = vld [vmem:[%s493 + $0x18] sm:$0xf]
      %v501 = vld [vmem:[%s493 + $0x1c] sm:$0xf]
      %v510 = vunpack.c.l.b16 %v494
      %v511 = vunpack.c.l.b16 %v495
      %v512 = vunpack.c.l.b16 %v496
      %v513 = vunpack.c.l.b16 %v497
      %v514 = vunpack.c.l.b16 %v498
      %v515 = vunpack.c.l.b16 %v499
      %v516 = vunpack.c.l.b16 %v500
      %v517 = vunpack.c.l.b16 %v501
      %v518 = vpack.c.b16 %v511, %v510
      %v519 = vpack.c.b16 %v513, %v512
      %v520 = vpack.c.b16 %v515, %v514
      %v521 = vpack.c.b16 %v517, %v516
      %v523 = vsel %vm318, %v518, 0
      %v526 = vsel %vm318, %v519, 0
      %v529 = vsel %vm318, %v520, 0
      %v532 = vsel %vm318, %v521, 0
      %534 = vmatprep.subr.bf16.mxu0 0
      %535 = vmatpush1.bf16.msra.mxu0 %v314
      %536 = vmatprep.subr.bf16.mxu0 0
      %537 = vmatpush1.bf16.msra.mxu0 %v315
      %538 = vmatprep.subr.bf16.mxu0 0
      %539 = vmatpush1.bf16.msra.mxu0 0
      %540 = vmatprep.subr.bf16.mxu0 0
      %541 = vmatpush1.bf16.msra.mxu0 0
      %542 = vmatprep.subr.bf16.mxu0 0
      %543 = vmatpush1.bf16.msra.mxu0 0
      %544 = vmatprep.subr.bf16.mxu0 0
      %545 = vmatpush1.bf16.msra.mxu0 0
      %546 = vmatprep.subr.bf16.mxu0 0
      %547 = vmatpush1.bf16.msra.mxu0 0
      %548 = vmatprep.subr.bf16.mxu0 0
      %549 = vmatpush1.bf16.msra.mxu0 0
      %550 = vmatprep.subr.bf16.mxu0 0
      %551 = vmatpush1.bf16.msra.mxu0 0
      %552 = vmatprep.subr.bf16.mxu0 0
      %553 = vmatpush1.bf16.msra.mxu0 0
      %554 = vmatprep.subr.bf16.mxu0 0
      %555 = vmatpush1.bf16.msra.mxu0 0
      %556 = vmatprep.subr.bf16.mxu0 0
      %557 = vmatpush1.bf16.msra.mxu0 0
      %558 = vmatprep.subr.bf16.mxu0 0
      %559 = vmatpush1.bf16.msra.mxu0 0
      %560 = vmatprep.subr.bf16.mxu0 0
      %561 = vmatpush1.bf16.msra.mxu0 0
      %562 = vmatprep.subr.bf16.mxu0 0
      %563 = vmatpush1.bf16.msra.mxu0 0
      %564 = vmatprep.subr.bf16.mxu0 0
      %565 = vmatpush1.bf16.msra.mxu0 0
      %566 = vmatprep.mubr.bf16.mxu0 0
      %567 = vmatmul.mubr.bf16.gmra.mrb[0].mxu0 %v523
      %v568 = vpop.f32.mrb[0].mxu0
      %v569 = vadd.f32 0.0, %v568
      %v570 = vpop.f32.mrb[0].mxu0
      %v571 = vpop.f32.mrb[0].mxu0
      %v572 = vadd.f32 0.0, %v571
      %v573 = vpop.f32.mrb[0].mxu0
      %574 = vmatprep.mubr.bf16.mxu0 0
      %575 = vmatmul.mubr.bf16.gmra.mrb[0].mxu0 %v526
      %v576 = vpop.f32.mrb[0].mxu0
      %v577 = vadd.f32 0.0, %v576
      %v578 = vpop.f32.mrb[0].mxu0
      %v579 = vpop.f32.mrb[0].mxu0
      %v580 = vadd.f32 0.0, %v579
      %v581 = vpop.f32.mrb[0].mxu0
      %582 = vmatprep.mubr.bf16.mxu0 0
      %583 = vmatmul.mubr.bf16.gmra.mrb[0].mxu0 %v529
      %v584 = vpop.f32.mrb[0].mxu0
      %v585 = vadd.f32 0.0, %v584
      %v586 = vpop.f32.mrb[0].mxu0
      %v587 = vpop.f32.mrb[0].mxu0
      %v588 = vadd.f32 0.0, %v587
      %v589 = vpop.f32.mrb[0].mxu0
      %590 = vmatprep.mubr.bf16.mxu0 0
      %591 = vmatmul.mubr.bf16.gmra.mrb[0].mxu0 %v532
      %v592 = vpop.f32.mrb[0].mxu0
      %v593 = vadd.f32 0.0, %v592
      %v594 = vpop.f32.mrb[0].mxu0
      %v595 = vpop.f32.mrb[0].mxu0
      %v596 = vadd.f32 0.0, %v595
      %v597 = vpop.f32.mrb[0].mxu0
      %598 = vdwg.mxu0
      %v599 = vadd.f32 %v463, %v569
      %v600 = vadd.f32 %v466, %v572
      %v601 = vadd.f32 %v471, %v577
      %v602 = vadd.f32 %v474, %v580
      %v603 = vadd.f32 %v479, %v585
      %v604 = vadd.f32 %v482, %v588
      %v605 = vadd.f32 %v487, %v593
      %v606 = vadd.f32 %v490, %v596
      %v607 = vld [vmem:[%s2] sm:$0x1]
      %v609 = vlaneseq
      %v610 = vshrl.u32 %v609, 7
      %v611 = vsub.s32 0, %v610
      %v612 = vrot.slane %v607, %v611
      %v614 = vadd.f32 %v599, %v612
      %v615 = vadd.f32 %v600, %v612
      %v616 = vadd.f32 %v601, %v612
      %v617 = vadd.f32 %v602, %v612
      %v618 = vadd.f32 %v603, %v612
      %v619 = vadd.f32 %v604, %v612
      %v620 = vadd.f32 %v605, %v612
      %v621 = vadd.f32 %v606, %v612
      %v622 = vmax.f32 %v614, 0.0
      %v623 = vmax.f32 %v615, 0.0
      %v624 = vmax.f32 %v616, 0.0
      %v625 = vmax.f32 %v617, 0.0
      %v626 = vmax.f32 %v618, 0.0
      %v627 = vmax.f32 %v619, 0.0
      %v628 = vmax.f32 %v620, 0.0
      %v629 = vmax.f32 %v621, 0.0
      %vm630 = vcmp.ne.f32.partialorder %v614, %v614
      %vm631 = vcmp.ne.f32.partialorder %v615, %v615
      %vm632 = vcmp.ne.f32.partialorder %v616, %v616
      %vm633 = vcmp.ne.f32.partialorder %v617, %v617
      %vm634 = vcmp.ne.f32.partialorder %v618, %v618
      %vm635 = vcmp.ne.f32.partialorder %v619, %v619
      %vm636 = vcmp.ne.f32.partialorder %v620, %v620
      %vm637 = vcmp.ne.f32.partialorder %v621, %v621
      %v638 = vadd.f32 %v614, 0.0
      %v639 = vadd.f32 %v615, 0.0
      %v640 = vadd.f32 %v616, 0.0
      %v641 = vadd.f32 %v617, 0.0
      %v642 = vadd.f32 %v618, 0.0
      %v643 = vadd.f32 %v619, 0.0
      %v644 = vadd.f32 %v620, 0.0
      %v645 = vadd.f32 %v621, 0.0
      %v646 = vand.u32 2147483647, %v614
      %v647 = vand.u32 2147483647, %v615
      %v648 = vand.u32 2147483647, %v616
      %v649 = vand.u32 2147483647, %v617
      %v650 = vand.u32 2147483647, %v618
      %v651 = vand.u32 2147483647, %v619
      %v652 = vand.u32 2147483647, %v620
      %v653 = vand.u32 2147483647, %v621
      %v654 = vsub.f32 0.0, %v646
      %v655 = vsub.f32 0.0, %v647
      %v656 = vsub.f32 0.0, %v648
      %v657 = vsub.f32 0.0, %v649
      %v658 = vsub.f32 0.0, %v650
      %v659 = vsub.f32 0.0, %v651
      %v660 = vsub.f32 0.0, %v652
      %v661 = vsub.f32 0.0, %v653
      %v662 = vmul.f32 %v654, 1.442695
      %v663 = vpow.pop %v662
      %v664 = vmul.f32 %v655, 1.442695
      %v665 = vpow.pop %v664
      %v666 = vmul.f32 %v656, 1.442695
      %v667 = vpow.pop %v666
      %v668 = vmul.f32 %v657, 1.442695
      %v669 = vpow.pop %v668
      %v670 = vmul.f32 %v658, 1.442695
      %v671 = vpow.pop %v670
      %v672 = vmul.f32 %v659, 1.442695
      %v673 = vpow.pop %v672
      %v674 = vmul.f32 %v660, 1.442695
      %v675 = vpow.pop %v674
      %v676 = vmul.f32 %v661, 1.442695
      %v677 = vpow.pop %v676
      %v678 = vadd.f32 %v663, 1.0
      %v679 = vlog2.pop %v678
      %v680 = vmul.f32 %v679, 0.6931472
      %v681 = vmul.f32 -0.5, %v663
      %v682 = vadd.f32 %v681, 1.0
      %v683 = vmul.f32 %v682, %v663
      %v684 = vand.u32 2147483647, %v663
      %vm685 = vcmp.lt.f32.partialorder %v684, 0.0004427343
      %v686 = vsel %vm685, %v683, %v680
      %v687 = vadd.f32 %v665, 1.0
      %v688 = vlog2.pop %v687
      %v689 = vmul.f32 %v688, 0.6931472
      %v690 = vmul.f32 -0.5, %v665
      %v691 = vadd.f32 %v690, 1.0
      %v692 = vmul.f32 %v691, %v665
      %v693 = vand.u32 2147483647, %v665
      %vm694 = vcmp.lt.f32.partialorder %v693, 0.0004427343
      %v695 = vsel %vm694, %v692, %v689
      %v696 = vadd.f32 %v667, 1.0
      %v697 = vlog2.pop %v696
      %v698 = vmul.f32 %v697, 0.6931472
      %v699 = vmul.f32 -0.5, %v667
      %v700 = vadd.f32 %v699, 1.0
      %v701 = vmul.f32 %v700, %v667
      %v702 = vand.u32 2147483647, %v667
      %vm703 = vcmp.lt.f32.partialorder %v702, 0.0004427343
      %v704 = vsel %vm703, %v701, %v698
      %v705 = vadd.f32 %v669, 1.0
      %v706 = vlog2.pop %v705
      %v707 = vmul.f32 %v706, 0.6931472
      %v708 = vmul.f32 -0.5, %v669
      %v709 = vadd.f32 %v708, 1.0
      %v710 = vmul.f32 %v709, %v669
      %v711 = vand.u32 2147483647, %v669
      %vm712 = vcmp.lt.f32.partialorder %v711, 0.0004427343
      %v713 = vsel %vm712, %v710, %v707
      %v714 = vadd.f32 %v671, 1.0
      %v715 = vlog2.pop %v714
      %v716 = vmul.f32 %v715, 0.6931472
      %v717 = vmul.f32 -0.5, %v671
      %v718 = vadd.f32 %v717, 1.0
      %v719 = vmul.f32 %v718, %v671
      %v720 = vand.u32 2147483647, %v671
      %vm721 = vcmp.lt.f32.partialorder %v720, 0.0004427343
      %v722 = vsel %vm721, %v719, %v716
      %v723 = vadd.f32 %v673, 1.0
      %v724 = vlog2.pop %v723
      %v725 = vmul.f32 %v724, 0.6931472
      %v726 = vmul.f32 -0.5, %v673
      %v727 = vadd.f32 %v726, 1.0
      %v728 = vmul.f32 %v727, %v673
      %v729 = vand.u32 2147483647, %v673
      %vm730 = vcmp.lt.f32.partialorder %v729, 0.0004427343
      %v731 = vsel %vm730, %v728, %v725
      %v732 = vadd.f32 %v675, 1.0
      %v733 = vlog2.pop %v732
      %v734 = vmul.f32 %v733, 0.6931472
      %v735 = vmul.f32 -0.5, %v675
      %v736 = vadd.f32 %v735, 1.0
      %v737 = vmul.f32 %v736, %v675
      %v738 = vand.u32 2147483647, %v675
      %vm739 = vcmp.lt.f32.partialorder %v738, 0.0004427343
      %v740 = vsel %vm739, %v737, %v734
      %v741 = vadd.f32 %v677, 1.0
      %v742 = vlog2.pop %v741
      %v743 = vmul.f32 %v742, 0.6931472
      %v744 = vmul.f32 -0.5, %v677
      %v745 = vadd.f32 %v744, 1.0
      %v746 = vmul.f32 %v745, %v677
      %v747 = vand.u32 2147483647, %v677
      %vm748 = vcmp.lt.f32.partialorder %v747, 0.0004427343
      %v749 = vsel %vm748, %v746, %v743
      %v750 = vadd.f32 %v622, %v686
      %v751 = vadd.f32 %v623, %v695
      %v752 = vadd.f32 %v624, %v704
      %v753 = vadd.f32 %v625, %v713
      %v754 = vadd.f32 %v626, %v722
      %v755 = vadd.f32 %v627, %v731
      %v756 = vadd.f32 %v628, %v740
      %v757 = vadd.f32 %v629, %v749
      %v758 = vsel %vm630, %v638, %v750
      %v759 = vsel %vm631, %v639, %v751
      %v760 = vsel %vm632, %v640, %v752
      %v761 = vsel %vm633, %v641, %v753
      %v762 = vsel %vm634, %v642, %v754
      %v763 = vsel %vm635, %v643, %v755
      %v764 = vsel %vm636, %v644, %v756
      %v765 = vsel %vm637, %v645, %v757
      %v766 = vld [vmem:[%s3] sm:$0xff]
      %v767 = vld [vmem:[%s3 + $0x8] sm:$0xff]
      %v768 = vld [vmem:[%s3 + $0x10] sm:$0xff]
      %v769 = vld [vmem:[%s3 + $0x18] sm:$0xff]
      %v770 = vld [vmem:[%s3 + $0x20] sm:$0xff]
      %v771 = vld [vmem:[%s3 + $0x28] sm:$0xff]
      %v772 = vld [vmem:[%s3 + $0x30] sm:$0xff]
      %v773 = vld [vmem:[%s3 + $0x38] sm:$0xff]
      %v774 = vld [vmem:[%s4] sm:$0x1]
      %v776 = vlaneseq
      %v777 = vshrl.u32 %v776, 7
      %v778 = vsub.s32 0, %v777
      %v779 = vrot.slane %v774, %v778
      %vm781 = vcmask 523264
      %v783 = vsel %vm781, %v758, 0
      %v786 = vsel %vm781, %v759, 0
      %v789 = vsel %vm781, %v760, 0
      %v792 = vsel %vm781, %v761, 0
      %v795 = vsel %vm781, %v762, 0
      %v798 = vsel %vm781, %v763, 0
      %v801 = vsel %vm781, %v764, 0
      %v804 = vsel %vm781, %v765, 0
      %806 = vmatprep.subr.mxu0 0.0
      %807 = vmatpush1.msra.mxu0 %v766
      %808 = vmatprep.subr.mxu0 0.0
      %809 = vmatpush1.msra.mxu0 %v767
      %810 = vmatprep.subr.mxu0 0.0
      %811 = vmatpush1.msra.mxu0 %v768
      %812 = vmatprep.subr.mxu0 0.0
      %813 = vmatpush1.msra.mxu0 %v769
      %814 = vmatprep.subr.mxu0 0.0
      %815 = vmatpush1.msra.mxu0 %v770
      %816 = vmatprep.subr.mxu0 0.0
      %817 = vmatpush1.msra.mxu0 %v771
      %818 = vmatprep.subr.mxu0 0.0
      %819 = vmatpush1.msra.mxu0 %v772
      %820 = vmatprep.subr.mxu0 0.0
      %821 = vmatpush1.msra.mxu0 %v773
      %822 = vmatprep.subr.mxu0 0.0
      %823 = vmatpush1.msra.mxu0 0.0
      %824 = vmatprep.subr.mxu0 0.0
      %825 = vmatpush1.msra.mxu0 0.0
      %826 = vmatprep.subr.mxu0 0.0
      %827 = vmatpush1.msra.mxu0 0.0
      %828 = vmatprep.subr.mxu0 0.0
      %829 = vmatpush1.msra.mxu0 0.0
      %830 = vmatprep.subr.mxu0 0.0
      %831 = vmatpush1.msra.mxu0 0.0
      %832 = vmatprep.subr.mxu0 0.0
      %833 = vmatpush1.msra.mxu0 0.0
      %834 = vmatprep.subr.mxu0 0.0
      %835 = vmatpush1.msra.mxu0 0.0
      %836 = vmatprep.subr.mxu0 0.0
      %837 = vmatpush1.msra.mxu0 0.0
      %838 = vmatprep.subr.mxu0 0.0
      %839 = vmatpush1.msra.mxu0 0.0
      %840 = vmatprep.subr.mxu0 0.0
      %841 = vmatpush1.msra.mxu0 0.0
      %842 = vmatprep.subr.mxu0 0.0
      %843 = vmatpush1.msra.mxu0 0.0
      %844 = vmatprep.subr.mxu0 0.0
      %845 = vmatpush1.msra.mxu0 0.0
      %846 = vmatprep.subr.mxu0 0.0
      %847 = vmatpush1.msra.mxu0 0.0
      %848 = vmatprep.subr.mxu0 0.0
      %849 = vmatpush1.msra.mxu0 0.0
      %850 = vmatprep.subr.mxu0 0.0
      %851 = vmatpush1.msra.mxu0 0.0
      %852 = vmatprep.subr.mxu0 0.0
      %853 = vmatpush1.msra.mxu0 0.0
      %854 = vmatprep.subr.mxu0 0.0
      %855 = vmatpush1.msra.mxu0 0.0
      %856 = vmatprep.subr.mxu0 0.0
      %857 = vmatpush1.msra.mxu0 0.0
      %858 = vmatprep.subr.mxu0 0.0
      %859 = vmatpush1.msra.mxu0 0.0
      %860 = vmatprep.subr.mxu0 0.0
      %861 = vmatpush1.msra.mxu0 0.0
      %862 = vmatprep.subr.mxu0 0.0
      %863 = vmatpush1.msra.mxu0 0.0
      %864 = vmatprep.subr.mxu0 0.0
      %865 = vmatpush1.msra.mxu0 0.0
      %866 = vmatprep.subr.mxu0 0.0
      %867 = vmatpush1.msra.mxu0 0.0
      %868 = vmatprep.subr.mxu0 0.0
      %869 = vmatpush1.msra.mxu0 0.0
      %870 = vmatprep.mubr.f32.mxu0 0.0
      %871 = vmatmul.mubr.f32.gmra.mrb[0].mxu0 %v783
      %v872 = vpop.f32.mrb[0].mxu0
      %v873 = vadd.f32 %v779, %v872
      %v874 = vpop.f32.mrb[0].mxu0
      %875 = vmatprep.mubr.f32.mxu0 0.0
      %876 = vmatmul.mubr.f32.gmra.mrb[0].mxu0 %v786
      %v877 = vpop.f32.mrb[0].mxu0
      %v878 = vadd.f32 %v779, %v877
      %v879 = vpop.f32.mrb[0].mxu0
      %880 = vmatprep.mubr.f32.mxu0 0.0
      %881 = vmatmul.mubr.f32.gmra.mrb[0].mxu0 %v789
      %v882 = vpop.f32.mrb[0].mxu0
      %v883 = vadd.f32 %v779, %v882
      %v884 = vpop.f32.mrb[0].mxu0
      %885 = vmatprep.mubr.f32.mxu0 0.0
      %886 = vmatmul.mubr.f32.gmra.mrb[0].mxu0 %v792
      %v887 = vpop.f32.mrb[0].mxu0
      %v888 = vadd.f32 %v779, %v887
      %v889 = vpop.f32.mrb[0].mxu0
      %890 = vmatprep.mubr.f32.mxu0 0.0
      %891 = vmatmul.mubr.f32.gmra.mrb[0].mxu0 %v795
      %v892 = vpop.f32.mrb[0].mxu0
      %v893 = vadd.f32 %v779, %v892
      %v894 = vpop.f32.mrb[0].mxu0
      %895 = vmatprep.mubr.f32.mxu0 0.0
      %896 = vmatmul.mubr.f32.gmra.mrb[0].mxu0 %v798
      %v897 = vpop.f32.mrb[0].mxu0
      %v898 = vadd.f32 %v779, %v897
      %v899 = vpop.f32.mrb[0].mxu0
      %900 = vmatprep.mubr.f32.mxu0 0.0
      %901 = vmatmul.mubr.f32.gmra.mrb[0].mxu0 %v801
      %v902 = vpop.f32.mrb[0].mxu0
      %v903 = vadd.f32 %v779, %v902
      %v904 = vpop.f32.mrb[0].mxu0
      %905 = vmatprep.mubr.f32.mxu0 0.0
      %906 = vmatmul.mubr.f32.gmra.mrb[0].mxu0 %v804
      %v907 = vpop.f32.mrb[0].mxu0
      %v908 = vadd.f32 %v779, %v907
      %v909 = vpop.f32.mrb[0].mxu0
      %910 = vdwg.mxu0
      %v911 = vxor.u32 %v873, 2147483648
      %v912 = vxor.u32 %v878, 2147483648
      %v913 = vxor.u32 %v883, 2147483648
      %v914 = vxor.u32 %v888, 2147483648
      %v915 = vxor.u32 %v893, 2147483648
      %v916 = vxor.u32 %v898, 2147483648
      %v917 = vxor.u32 %v903, 2147483648
      %v918 = vxor.u32 %v908, 2147483648
      %v919 = vmul.f32 %v911, 1.442695
      %v920 = vpow.pop %v919
      %v921 = vmul.f32 %v912, 1.442695
      %v922 = vpow.pop %v921
      %v923 = vmul.f32 %v913, 1.442695
      %v924 = vpow.pop %v923
      %v925 = vmul.f32 %v914, 1.442695
      %v926 = vpow.pop %v925
      %v927 = vmul.f32 %v915, 1.442695
      %v928 = vpow.pop %v927
      %v929 = vmul.f32 %v916, 1.442695
      %v930 = vpow.pop %v929
      %v931 = vmul.f32 %v917, 1.442695
      %v932 = vpow.pop %v931
      %v933 = vmul.f32 %v918, 1.442695
      %v934 = vpow.pop %v933
      %v935 = vadd.f32 %v920, 1.0
      %v936 = vadd.f32 %v922, 1.0
      %v937 = vadd.f32 %v924, 1.0
      %v938 = vadd.f32 %v926, 1.0
      %v939 = vadd.f32 %v928, 1.0
      %v940 = vadd.f32 %v930, 1.0
      %v941 = vadd.f32 %v932, 1.0
      %v942 = vadd.f32 %v934, 1.0
      %v943 = vrcp.pop %v935
      %v944 = vmul.f32 1.0, %v943
      %v945 = vrcp.pop %v936
      %v946 = vmul.f32 1.0, %v945
      %v947 = vrcp.pop %v937
      %v948 = vmul.f32 1.0, %v947
      %v949 = vrcp.pop %v938
      %v950 = vmul.f32 1.0, %v949
      %v951 = vrcp.pop %v939
      %v952 = vmul.f32 1.0, %v951
      %v953 = vrcp.pop %v940
      %v954 = vmul.f32 1.0, %v953
      %v955 = vrcp.pop %v941
      %v956 = vmul.f32 1.0, %v955
      %v957 = vrcp.pop %v942
      %v958 = vmul.f32 1.0, %v957
      %v959 = vmul.f32 %v944, 1.002
      %v960 = vmul.f32 %v946, 1.002
      %v961 = vmul.f32 %v948, 1.002
      %v962 = vmul.f32 %v950, 1.002
      %v963 = vmul.f32 %v952, 1.002
      %v964 = vmul.f32 %v954, 1.002
      %v965 = vmul.f32 %v956, 1.002
      %v966 = vmul.f32 %v958, 1.002
      %v967 = vsub.f32 %v959, 0.001
      %v968 = vsub.f32 %v960, 0.001
      %v969 = vsub.f32 %v961, 0.001
      %v970 = vsub.f32 %v962, 0.001
      %v971 = vsub.f32 %v963, 0.001
      %v972 = vsub.f32 %v964, 0.001
      %v973 = vsub.f32 %v965, 0.001
      %v974 = vsub.f32 %v966, 0.001
      %v975 = vlaneseq
      %v976 = vand.u32 %v975, 127
      %vm977 = vcmp.lt.s32.totalorder %v976, 32
      %v978 = vsel %vm977, %v967, %v873
      %v979 = vsel %vm977, %v968, %v878
      %v980 = vsel %vm977, %v969, %v883
      %v981 = vsel %vm977, %v970, %v888
      %v982 = vsel %vm977, %v971, %v893
      %v983 = vsel %vm977, %v972, %v898
      %v984 = vsel %vm977, %v973, %v903
      %v985 = vsel %vm977, %v974, %v908
      %vm986 = vcmask 269312
      %987 = vst.msk [vmem:[%s262] sm:$0xff] %vm986, %v978
      %988 = vst.msk [vmem:[%s262 + $0x8] sm:$0xff] %vm986, %v979
      %989 = vst.msk [vmem:[%s262 + $0x10] sm:$0xff] %vm986, %v980
      %990 = vst.msk [vmem:[%s262 + $0x18] sm:$0xff] %vm986, %v981
      %991 = vst.msk [vmem:[%s262 + $0x20] sm:$0xff] %vm986, %v982
      %992 = vst.msk [vmem:[%s262 + $0x28] sm:$0xff] %vm986, %v983
      %993 = vst.msk [vmem:[%s262 + $0x30] sm:$0xff] %vm986, %v984
      %994 = vst.msk [vmem:[%s262 + $0x38] sm:$0xff] %vm986, %v985
      %s995 = smul.u32 8, %s21
      %p996 = scmp.lt.s32.totalorder %s20, 1
      %s997 = scalar_select %p996, %s20, 1
      %p998 = scmp.lt.s32.totalorder %s995, 7
      %s999 = scalar_select %p998, %s995, 7
      %s1000 = smul.addr %s997, 8
      %s1001 = sadd.s32 %s999, %s1000
      %s1002 = smul.addr %s1001, 8
      %s1003 = scalar_lea.vmem %s5, %s1002
      // Predicated region
      $region41: #{tpu_custom_call.1} parent=39 // pred_check
        %p1004 = pneg %p160
      $region42: #{tpu_custom_call.1} parent=39 // pred_check_branch
        %1006 = sbr.rel (%p1004) target = $region44
      $region43: #{tpu_custom_call.1} parent=39 // pred_region
        %s1007 = smul.u32 8, %s21
      $region44: #{tpu_custom_call.1} parent=39 // pred_fallthru
        _
    $region40: #{tpu_custom_call.1} parent=5 // pred_fallthru
      _
    %p1008 = scmp.le.s32.totalorder 2, %s11
    // Predicated region
    $region45: #{tpu_custom_call.1} parent=5 // pred_check
      %p1009 = pneg %p1008
    $region46: #{tpu_custom_call.1} parent=5 // pred_check_branch
      %1011 = sbr.rel (%p1009) target = $region48
    $region47: #{tpu_custom_call.1} parent=5 // pred_region
      %s1012 = ssub.s32 %s11, 2
      // Predicated region
      $region49: #{tpu_custom_call.1} parent=47 // pred_check
        %p1013 = pneg %p166
      $region50: #{tpu_custom_call.1} parent=47 // pred_check_branch
        %1015 = sbr.rel (%p1013) target = $region52
      $region51: #{tpu_custom_call.1} parent=47 // pred_region
        %s1016 = smul.u32 8, %s23
        %p1017 = scmp.lt.s32.totalorder %s22, 1
        %s1018 = scalar_select %p1017, %s22, 1
        %p1019 = scmp.lt.s32.totalorder %s1016, 7
        %s1020 = scalar_select %p1019, %s1016, 7
        %s1021 = smul.addr %s1018, 8
        %s1022 = sadd.s32 %s1020, %s1021
        %s1023 = smul.addr %s1022, 8
        %s1024 = scalar_lea.vmem %s5, %s1023
      $region52: #{tpu_custom_call.1} parent=47 // pred_fallthru
        _
    $region48: #{tpu_custom_call.1} parent=5 // pred_fallthru
      _
  $region6: #{tpu_custom_call.1} parent=0 // loop_footer
    %s15 = sadd.s32 1, %s11
  $region7: #{tpu_custom_call.1} parent=0 // loop_footer_branch
    %10 = sbr.rel target = $region3
  $region8: #{tpu_custom_call.1} parent=0 // loop_exit
    _

</llo_original>
